<compile_context>
chip_gen: v6e
topology: v6e:2x2x1
jax: 0.10.0
libtpu: 0.0.40
codegen_flags: <defaults>
</compile_context>

<pallas_src>
import math

import jax
import jax.numpy as jnp
from jax.experimental import pallas as pl
from jax.experimental.pallas import tpu as pltpu


def _chunk_plan(n0: int, bytes_per_row: int):
    """Static chunk plan along axis 0 of the view.

    Targets ~8 chunks of >= ~1 MiB each, but always emits >= 2 chunks when the
    leading axis allows it so successive DMAs overlap (read of chunk i+1 with
    write-back of chunk i).
    """
    if n0 <= 1:
        return ((0, n0),)
    target_chunks = 8
    min_chunk_bytes = 1 << 20  # avoid swarms of tiny DMA descriptors
    rows = max(
        -(-n0 // target_chunks),
        -(-min_chunk_bytes // max(bytes_per_row, 1)),
        1,
    )
    rows = min(rows, -(-n0 // 2))  # never collapse below 2 chunks
    return tuple((s, min(rows, n0 - s)) for s in range(0, n0, rows))


def _make_identity_dma_kernel(chunks):
    """Kernel: chunked HBM->HBM copy. Start all DMAs, then wait them all."""

    def kernel(x_hbm, o_hbm, sems):
        copies = []
        for c, (start, size) in enumerate(chunks):
            cp = pltpu.make_async_copy(
                x_hbm.at[pl.ds(start, size)],
                o_hbm.at[pl.ds(start, size)],
                sems.at[c],
            )
            cp.start()
            copies.append(cp)
        for cp in copies:
            cp.wait()

    return kernel


def identity(x: jax.Array) -> jax.Array:
    """Identity forward pass as a chunked HBM->HBM DMA Pallas kernel."""
    orig_shape = x.shape
    if x.size == 0:
        return x  # nothing to move

    # Collapse dims *before* the last two (always layout-free on TPU) so we
    # have a leading axis to chunk DMAs along. 0-D becomes (1,).
    if x.ndim == 0:
        view = x.reshape(1)
    elif x.ndim > 3:
        lead = math.prod(x.shape[:-2])
        view = x.reshape(lead, x.shape[-2], x.shape[-1])
    else:
        view = x

    n0 = view.shape[0]
    itemsize = jnp.dtype(view.dtype).itemsize
    bytes_per_row = (view.size // n0) * itemsize
    chunks = _chunk_plan(n0, bytes_per_row)
    n_chunks = len(chunks)

    out = pl.pallas_call(
        _make_identity_dma_kernel(chunks),
        out_shape=jax.ShapeDtypeStruct(view.shape, view.dtype),
        # Raw HBM refs in and out: no auto-DMA, no VMEM tiles, no grid.
        in_specs=[pl.BlockSpec(memory_space=pl.ANY)],
        out_specs=pl.BlockSpec(memory_space=pl.ANY),
        scratch_shapes=[pltpu.SemaphoreType.DMA((n_chunks,))],
        cost_estimate=pl.CostEstimate(
            flops=0,
            transcendentals=0,
            bytes_accessed=2 * x.size * itemsize,
        ),
    )(view)

    return out.reshape(orig_shape)


if __name__ == "__main__":
    key = jax.random.PRNGKey(0)
    # Shape consistent with a typical conv-style input: NCHW = (2, 4, 16, 16)
    x = jax.random.normal(key, (2, 4, 16, 16), dtype=jnp.float32)

    y = identity(x)
    jax.block_until_ready(y)

    assert y.shape == x.shape
    assert y.dtype == x.dtype
    assert bool(jnp.all(y == x))

    print("KERNEL_OK")
</pallas_src>

<mosaic_0001>
module attributes {stable_mosaic.version = 11 : i64} {
  func.func @kernel(%arg0: memref<8x16x16xf32, #tpu.memory_space<any>>, %arg1: memref<8x16x16xf32, #tpu.memory_space<any>>, %arg2: memref<2x!tpu.dma_semaphore, #tpu.memory_space<semaphore_mem>>) attributes {dimension_semantics = [], scalar_prefetch = 0 : i64, scratch_operands = 1 : i64, tpu.core_type = #tpu.core_type<tc>} {
    %c0_i32 = arith.constant 0 : i32
    %c0_i32_0 = arith.constant 0 : i32
    %c0_i32_1 = arith.constant 0 : i32
    %c0_i32_2 = arith.constant 0 : i32
    %0 = tpu.memref_slice %arg0[%c0_i32_0, %c0_i32_1, %c0_i32_2] : memref<8x16x16xf32, #tpu.memory_space<any>> -> memref<4x16x16xf32, #tpu.memory_space<any>>
    %c0_i32_3 = arith.constant 0 : i32
    %c0_i32_4 = arith.constant 0 : i32
    %c0_i32_5 = arith.constant 0 : i32
    %1 = tpu.memref_slice %arg1[%c0_i32_3, %c0_i32_4, %c0_i32_5] : memref<8x16x16xf32, #tpu.memory_space<any>> -> memref<4x16x16xf32, #tpu.memory_space<any>>
    %2 = tpu.memref_slice %arg2[%c0_i32] : memref<2x!tpu.dma_semaphore, #tpu.memory_space<semaphore_mem>> -> memref<1x!tpu.dma_semaphore, #tpu.memory_space<semaphore_mem>>
    %3 = tpu.memref_squeeze %2 : memref<1x!tpu.dma_semaphore, #tpu.memory_space<semaphore_mem>> -> memref<!tpu.dma_semaphore, #tpu.memory_space<semaphore_mem>>
    tpu.enqueue_dma source(%0 : memref<4x16x16xf32, #tpu.memory_space<any>>) target(%1 : memref<4x16x16xf32, #tpu.memory_space<any>>) target_semaphore(%3 : memref<!tpu.dma_semaphore, #tpu.memory_space<semaphore_mem>>)
    %c1_i32 = arith.constant 1 : i32
    %c4_i32 = arith.constant 4 : i32
    %c0_i32_6 = arith.constant 0 : i32
    %c0_i32_7 = arith.constant 0 : i32
    %4 = tpu.memref_slice %arg0[%c4_i32, %c0_i32_6, %c0_i32_7] : memref<8x16x16xf32, #tpu.memory_space<any>> -> memref<4x16x16xf32, #tpu.memory_space<any>>
    %c4_i32_8 = arith.constant 4 : i32
    %c0_i32_9 = arith.constant 0 : i32
    %c0_i32_10 = arith.constant 0 : i32
    %5 = tpu.memref_slice %arg1[%c4_i32_8, %c0_i32_9, %c0_i32_10] : memref<8x16x16xf32, #tpu.memory_space<any>> -> memref<4x16x16xf32, #tpu.memory_space<any>>
    %6 = tpu.memref_slice %arg2[%c1_i32] : memref<2x!tpu.dma_semaphore, #tpu.memory_space<semaphore_mem>> -> memref<1x!tpu.dma_semaphore, #tpu.memory_space<semaphore_mem>>
    %7 = tpu.memref_squeeze %6 : memref<1x!tpu.dma_semaphore, #tpu.memory_space<semaphore_mem>> -> memref<!tpu.dma_semaphore, #tpu.memory_space<semaphore_mem>>
    tpu.enqueue_dma source(%4 : memref<4x16x16xf32, #tpu.memory_space<any>>) target(%5 : memref<4x16x16xf32, #tpu.memory_space<any>>) target_semaphore(%7 : memref<!tpu.dma_semaphore, #tpu.memory_space<semaphore_mem>>)
    %c0_i32_11 = arith.constant 0 : i32
    %c0_i32_12 = arith.constant 0 : i32
    %c0_i32_13 = arith.constant 0 : i32
    %c0_i32_14 = arith.constant 0 : i32
    %8 = tpu.memref_slice %arg0[%c0_i32_12, %c0_i32_13, %c0_i32_14] : memref<8x16x16xf32, #tpu.memory_space<any>> -> memref<4x16x16xf32, #tpu.memory_space<any>>
    %c0_i32_15 = arith.constant 0 : i32
    %c0_i32_16 = arith.constant 0 : i32
    %c0_i32_17 = arith.constant 0 : i32
    %9 = tpu.memref_slice %arg1[%c0_i32_15, %c0_i32_16, %c0_i32_17] : memref<8x16x16xf32, #tpu.memory_space<any>> -> memref<4x16x16xf32, #tpu.memory_space<any>>
    %10 = tpu.memref_slice %arg2[%c0_i32_11] : memref<2x!tpu.dma_semaphore, #tpu.memory_space<semaphore_mem>> -> memref<1x!tpu.dma_semaphore, #tpu.memory_space<semaphore_mem>>
    %11 = tpu.memref_squeeze %10 : memref<1x!tpu.dma_semaphore, #tpu.memory_space<semaphore_mem>> -> memref<!tpu.dma_semaphore, #tpu.memory_space<semaphore_mem>>
    tpu.wait_dma2 semaphore(%11 : memref<!tpu.dma_semaphore, #tpu.memory_space<semaphore_mem>>) src(%8 : memref<4x16x16xf32, #tpu.memory_space<any>>) dst(%9 : memref<4x16x16xf32, #tpu.memory_space<any>>)
    %c1_i32_18 = arith.constant 1 : i32
    %c4_i32_19 = arith.constant 4 : i32
    %c0_i32_20 = arith.constant 0 : i32
    %c0_i32_21 = arith.constant 0 : i32
    %12 = tpu.memref_slice %arg0[%c4_i32_19, %c0_i32_20, %c0_i32_21] : memref<8x16x16xf32, #tpu.memory_space<any>> -> memref<4x16x16xf32, #tpu.memory_space<any>>
    %c4_i32_22 = arith.constant 4 : i32
    %c0_i32_23 = arith.constant 0 : i32
    %c0_i32_24 = arith.constant 0 : i32
    %13 = tpu.memref_slice %arg1[%c4_i32_22, %c0_i32_23, %c0_i32_24] : memref<8x16x16xf32, #tpu.memory_space<any>> -> memref<4x16x16xf32, #tpu.memory_space<any>>
    %14 = tpu.memref_slice %arg2[%c1_i32_18] : memref<2x!tpu.dma_semaphore, #tpu.memory_space<semaphore_mem>> -> memref<1x!tpu.dma_semaphore, #tpu.memory_space<semaphore_mem>>
    %15 = tpu.memref_squeeze %14 : memref<1x!tpu.dma_semaphore, #tpu.memory_space<semaphore_mem>> -> memref<!tpu.dma_semaphore, #tpu.memory_space<semaphore_mem>>
    tpu.wait_dma2 semaphore(%15 : memref<!tpu.dma_semaphore, #tpu.memory_space<semaphore_mem>>) src(%12 : memref<4x16x16xf32, #tpu.memory_space<any>>) dst(%13 : memref<4x16x16xf32, #tpu.memory_space<any>>)
    return
  }
}

</mosaic_0001>

<llo_original>
// kernel: tpu_custom_call.1
$region0: #{tpu_custom_call.1}
  #allocation0 [shape = 'u32[]', space=smem, size = 0x4, offset = 0x4, fixed_abs, tag = 'smem constant byte address 0x4 - core index']
  #allocation1 [shape = 'u32[144,128]{1,0:T(1,128)}', space=vmem, size = 0x12000, scoped, tag = 'internal scratch']
  #allocation2 [shape = 's32[2]{0}', space=sflag, size = 0x8, scoped, tag = 'scratch operand']
  #allocation3 [shape = 's32[]', space=sflag, size = 0x4, offset = 0, fixed_abs, tag = 'sflag constant byte address 0x0 - dummy sync flag']
  #allocation4 [shape = 'u32[0]{0}', space=smem, size = 0, offset = 0, fixed_abs, tag = 'smem constant byte address 0x0 - null']
  #allocation5 [shape = 's32[]', space=sflag, size = 0x4, offset = 0, fixed_abs, tag = 'sflag constant byte address 0x0 - dummy sync flag']
  #allocation6 [shape = 'u32[0]{0}', space=smem, size = 0, offset = 0, fixed_abs, tag = 'smem constant byte address 0x0 - null']
  %s0 = inlined_call_operand.hbm [shape: f32[8,16,16], index: 0, kind: input, shape index: {}]
  %s1 = inlined_call_operand.hbm [shape: f32[8,16,16], index: 1, kind: output, shape index: {}]
  %s2 = sld [smem:[#allocation0]]
  $region2: #{tpu_custom_call.1} parent=0
    _
  %s4 = ssub.s32 1, %s2
  %s5 = scalar_select 0, %s4, %s2
  %s7 = sshll.u32 1, 14
  %s8 = sxor.u32 4294967295, %s7
  %12 = dma.general %s0, 1024, %s1, [#allocation2], 131072, [#allocation4], 0, 0
  %s13 = scalar_lea.hbm %s0, 1024
  %s14 = scalar_lea.hbm %s1, 1024
  %s15 = scalar_lea.sflag [#allocation2], 1
  %s17 = sshll.u32 1, 14
  %s18 = sxor.u32 4294967295, %s17
  %22 = dma.general %s13, 1024, %s14, %s15, 131072, [#allocation6], 0, 0
  %s23 = smul.u32 4, 16
  %s24 = smul.u32 %s23, 1
  %s25 = sshll.u32 %s24, 4
  %26 = dma.done [#allocation2], %s25
  %s27 = sshll.u32 %s24, 4
  %28 = dma.done %s15, %s27
  %29 = vsyncmov [#allocation2]
  %s30 = vpop.sfrf %29
  %p31 = scmp.eq.s32.totalorder %s30, 0
  %p32 = pneg %p31
  %34 = shalt.err (%p32)
  %s35 = scalar_lea.sflag [#allocation2], 1
  %36 = vsyncmov %s35
  %s37 = vpop.sfrf %36
  %p38 = scmp.eq.s32.totalorder %s37, 0
  %p39 = pneg %p38
  %41 = shalt.err (%p39)

</llo_original>
